<compile_context>
chip_gen: v7x
topology: tpu7x:2x2x1
jax: 0.10.0
libtpu: 0.0.40
codegen_flags: <defaults>
</compile_context>

<pallas_src>
import math

import jax
import jax.numpy as jnp
from jax.experimental import pallas as pl
from jax.experimental.pallas import tpu as pltpu


def _round_up(x, m):
    return ((x + m - 1) // m) * m


# ---------------------------------------------------------------------------
# ScaleShift kernel
# ---------------------------------------------------------------------------
def _scale_shift_kernel(x_ref, w_ref, b_ref, o_ref):
    # x_ref/o_ref: (tb, tn) dense tiles; w_ref/b_ref: (1, tn), broadcast over
    # the tb batch rows by plain jnp broadcasting.  Pure VPU FMA.
    o_ref[...] = x_ref[...] * w_ref[...] + b_ref[...]


def scale_shift(x, weight, bias, *, block_batch=None, block_feat=None):
    """x: (B, *feat); weight, bias: feat-shaped. Returns x * weight + bias."""
    B = x.shape[0]
    feat_shape = x.shape[1:]
    N = math.prod(feat_shape)
    itemsize = jnp.dtype(x.dtype).itemsize

    x2 = x.reshape(B, N)
    w2 = weight.reshape(1, N)
    b2 = bias.reshape(1, N)

    # --- tile sizes -------------------------------------------------------
    # Batch tile: sublane-dense, dtype-aware (f32: 8, bf16: 16, int8/fp8: 32).
    sub = max(8, 32 // itemsize)
    if block_batch is None:
        tb = min(max(64, sub), _round_up(B, sub))
    else:
        tb = _round_up(block_batch, sub)

    # Feature tile: lane-dense (multiple of 128).  Target ~4 MiB per x tile:
    # double-buffered x + out is ~16 MiB, under the 32 MiB scoped VMEM limit
    # everywhere (incl. v7x's 64 MiB physical VMEM) while amortizing the
    # ~0.35 us per-grid-step overhead even at v7x's ~3.2 TB/s HBM.
    if block_feat is None:
        target_block_bytes = 4 * 1024 * 1024
        tn = _round_up(max(512, target_block_bytes // (tb * itemsize)), 128)
        tn = min(tn, 65536)
    else:
        tn = _round_up(block_feat, 128)
    tn = min(tn, _round_up(N, 128))

    # Grid: feature-tile axis OUTER, batch-tile axis INNER -> the (0, j)
    # weight/bias block index is constant across consecutive steps, so w/b
    # are fetched from HBM once per feature tile (not once per batch tile).
    # No padding / slicing of x or the output: pl.cdiv + partial edge tiles.
    # (Garbage in the OOB region of an edge tile is harmless: the op is
    # purely elementwise and edge writes are masked — do NOT add any
    # cross-element reduction here without re-adding explicit masking.)
    grid = (pl.cdiv(N, tn), pl.cdiv(B, tb))

    out2 = pl.pallas_call(
        _scale_shift_kernel,
        out_shape=jax.ShapeDtypeStruct((B, N), x.dtype),
        grid_spec=pltpu.PrefetchScalarGridSpec(
            num_scalar_prefetch=0,
            grid=grid,
            in_specs=[
                pl.BlockSpec((tb, tn), lambda j, i: (i, j)),  # x tile
                pl.BlockSpec((1, tn), lambda j, i: (0, j)),   # weight (reused)
                pl.BlockSpec((1, tn), lambda j, i: (0, j)),   # bias   (reused)
            ],
            out_specs=pl.BlockSpec((tb, tn), lambda j, i: (i, j)),
        ),
        compiler_params=pltpu.CompilerParams(
            dimension_semantics=("parallel", "parallel"),
            vmem_limit_bytes=32 * 1024 * 1024,
        ),
        cost_estimate=pl.CostEstimate(
            flops=2 * B * N,
            transcendentals=0,
            bytes_accessed=(2 * B * N + 2 * N) * itemsize,
        ),
    )(x2, w2, b2)

    return out2.reshape(x.shape)


# ---------------------------------------------------------------------------
# Fused bilinear critic heads: p[b] = u[b]^T @ C @ v[b], q[b] = u_q^T @ C @ v_q
# ---------------------------------------------------------------------------
def _bilinear_kernel(uu_ref, vv_ref, c_ref, o_ref):
    # uu/vv: (tb, D) stacked [u; u_q] / [v; v_q] batch tiles; c: (D, D) kept
    # resident across the batch grid.  One MXU matmul (f32 accumulate) per
    # tile, then an elementwise multiply + lane reduction against vv.
    t = jnp.dot(uu_ref[...], c_ref[...], preferred_element_type=jnp.float32)
    s = jnp.sum(t * vv_ref[...].astype(jnp.float32), axis=-1, keepdims=True)
    o_ref[...] = s


def bilinear_heads(u, v, u_q, v_q, c, *, block_batch=128):
    """u, v, u_q, v_q: (B, D); c: (D, D).

    Returns (p, q), each (B, 1) float32, with p[b] = u[b] @ c @ v[b] and
    q[b] = u_q[b] @ c @ v_q[b].  Both heads share a single pallas_call
    (single launch, C DMA'd once, doubled MXU occupancy per pass).
    """
    B, D = u.shape
    B2 = 2 * B
    uu = jnp.concatenate([u, u_q], axis=0)   # (2B, D) — tiny copy
    vv = jnp.concatenate([v, v_q], axis=0)

    tb = min(_round_up(block_batch, 8), _round_up(B2, 8))
    grid = (pl.cdiv(B2, tb),)

    out = pl.pallas_call(
        _bilinear_kernel,
        out_shape=jax.ShapeDtypeStruct((B2, 1), jnp.float32),
        grid_spec=pl.GridSpec(
            grid=grid,
            in_specs=[
                pl.BlockSpec((tb, D), lambda i: (i, 0)),   # stacked u
                pl.BlockSpec((tb, D), lambda i: (i, 0)),   # stacked v
                pl.BlockSpec((D, D), lambda i: (0, 0)),    # C (resident)
            ],
            out_specs=pl.BlockSpec((tb, 1), lambda i: (i, 0)),
        ),
        compiler_params=pltpu.CompilerParams(
            dimension_semantics=("parallel",),
        ),
        cost_estimate=pl.CostEstimate(
            flops=2 * B2 * D * D + 2 * B2 * D,
            transcendentals=0,
            bytes_accessed=(2 * B2 * D + D * D) * jnp.dtype(u.dtype).itemsize
            + B2 * 4,
        ),
    )(uu, vv, c)

    return out[:B], out[B:]


# ---------------------------------------------------------------------------
if __name__ == "__main__":
    key = jax.random.PRNGKey(0)
    kx, kw, ku, kv, kuq, kvq, kc = jax.random.split(key, 7)

    # --- ScaleShift check (NCHW activations inside the backbones) ---------
    B, C, H, W = 2, 4, 16, 16
    x = jax.random.normal(kx, (B, C, H, W), dtype=jnp.float32)
    # ScaleShift.init_wb: weight ~ N(1.0, 0.02), bias = 0, shaped x.shape[1:]
    weight = 1.0 + 0.02 * jax.random.normal(kw, (C, H, W), dtype=jnp.float32)
    bias = jnp.zeros((C, H, W), dtype=jnp.float32)

    out = scale_shift(x, weight, bias)
    out = jax.block_until_ready(out)
    ref = x * weight[None] + bias[None]
    assert out.shape == x.shape
    assert jnp.allclose(out, ref, atol=1e-6, rtol=1e-6), "ScaleShift mismatch"

    # --- Fused bilinear head check (p, q of the module forward) -----------
    D = 32  # num_classes == fc_out_features
    u = jax.random.normal(ku, (B, D), dtype=jnp.float32)
    v = jax.random.normal(kv, (B, D), dtype=jnp.float32)
    u_q = jax.random.normal(kuq, (B, D), dtype=jnp.float32)
    v_q = jax.random.normal(kvq, (B, D), dtype=jnp.float32)
    c = jax.random.normal(kc, (D, D), dtype=jnp.float32) / jnp.sqrt(float(D))

    p, q = bilinear_heads(u, v, u_q, v_q, c)
    p, q = jax.block_until_ready((p, q))
    p_ref = jnp.einsum("bi,ij,bj->b", u, c, v)[:, None]
    q_ref = jnp.einsum("bi,ij,bj->b", u_q, c, v_q)[:, None]
    assert p.shape == (B, 1) and q.shape == (B, 1)
    assert jnp.allclose(p, p_ref, atol=1e-4, rtol=1e-4), "bilinear p mismatch"
    assert jnp.allclose(q, q_ref, atol=1e-4, rtol=1e-4), "bilinear q mismatch"

    print("KERNEL_OK")
</pallas_src>

<mosaic_0001>
module attributes {stable_mosaic.version = 11 : i64} {
  func.func @_scale_shift_kernel(%arg0: i32, %arg1: i32, %arg2: memref<8x1024xf32, #tpu.memory_space<vmem>>, %arg3: memref<1x1024xf32, #tpu.memory_space<vmem>>, %arg4: memref<1x1024xf32, #tpu.memory_space<vmem>>, %arg5: memref<8x1024xf32, #tpu.memory_space<vmem>>) attributes {dimension_semantics = [#tpu.dimension_semantics<parallel>, #tpu.dimension_semantics<parallel>], iteration_bounds = array<i64: 1, 1>, scalar_prefetch = 0 : i64, scratch_operands = 0 : i64, tpu.core_type = #tpu.core_type<tc>, window_params = [{transform_indices = @transform_0, window_bounds = array<i64: 8, 1024>}, {transform_indices = @transform_1, window_bounds = array<i64: 1, 1024>}, {transform_indices = @transform_2, window_bounds = array<i64: 1, 1024>}, {transform_indices = @transform_3, window_bounds = array<i64: 8, 1024>}]} {
    %c0 = arith.constant 0 : index
    %c0_0 = arith.constant 0 : index
    %0 = vector.load %arg2[%c0, %c0_0] : memref<8x1024xf32, #tpu.memory_space<vmem>>, vector<8x1024xf32>
    %c0_1 = arith.constant 0 : index
    %c0_2 = arith.constant 0 : index
    %1 = vector.load %arg3[%c0_1, %c0_2] : memref<1x1024xf32, #tpu.memory_space<vmem>>, vector<1x1024xf32>
    %2 = vector.broadcast %1 : vector<1x1024xf32> to vector<8x1024xf32>
    %3 = arith.mulf %0, %2 : vector<8x1024xf32>
    %c0_3 = arith.constant 0 : index
    %c0_4 = arith.constant 0 : index
    %4 = vector.load %arg4[%c0_3, %c0_4] : memref<1x1024xf32, #tpu.memory_space<vmem>>, vector<1x1024xf32>
    %5 = vector.broadcast %4 : vector<1x1024xf32> to vector<8x1024xf32>
    %6 = arith.addf %3, %5 : vector<8x1024xf32>
    %c0_5 = arith.constant 0 : index
    %c0_6 = arith.constant 0 : index
    %7 = vector.load %arg5[%c0_5, %c0_6] : memref<8x1024xf32, #tpu.memory_space<vmem>>, vector<8x1024xf32>
    tpu.vector_store %arg5[%c0_5, %c0_6], %6 {strides = array<i32>} : memref<8x1024xf32, #tpu.memory_space<vmem>>, vector<8x1024xf32>,
    return
  }
  func.func @transform_0(%arg0: i32, %arg1: i32) -> (i32, i32) {
    %c0_i32 = arith.constant 0 : i32
    return %arg1, %arg0 : i32, i32
  }
  func.func @transform_1(%arg0: i32, %arg1: i32) -> (i32, i32) {
    %c0_i32 = arith.constant 0 : i32
    %c0_i32_0 = arith.constant 0 : i32
    return %c0_i32, %arg0 : i32, i32
  }
  func.func @transform_2(%arg0: i32, %arg1: i32) -> (i32, i32) {
    %c0_i32 = arith.constant 0 : i32
    %c0_i32_0 = arith.constant 0 : i32
    return %c0_i32, %arg0 : i32, i32
  }
  func.func @transform_3(%arg0: i32, %arg1: i32) -> (i32, i32) {
    %c0_i32 = arith.constant 0 : i32
    return %arg1, %arg0 : i32, i32
  }
}

</mosaic_0001>

<llo_original>
// kernel: tpu_custom_call.1
$region0: #{tpu_custom_call.1}
  #allocation0 [shape = 'u32[]', space=smem, size = 0x4, offset = 0x4, fixed_abs, tag = 'smem constant byte address 0x4 - core index']
  #allocation1 [shape = 'u32[144,128]{1,0:T(1,128)}', space=vmem, size = 0x12000, scoped, tag = 'internal scratch']
  %s0 = inlined_call_operand.hbm [shape: f32[2,1024], index: 0, kind: input, shape index: {}]
  %s1 = inlined_call_operand.hbm [shape: f32[1,1024], index: 1, kind: input, shape index: {}]
  %s2 = inlined_call_operand.hbm [shape: f32[1,1024], index: 2, kind: input, shape index: {}]
  %s3 = inlined_call_operand.hbm [shape: f32[2,1024], index: 3, kind: output, shape index: {}]
  %s4 = sld [smem:[#allocation0]]
  $region34: #{tpu_custom_call.1} parent=0
    _
  %s6 = ssub.s32 1, %s4
  %s7 = scalar_select 0, %s6, %s4
  $region1: #{tpu_custom_call.1} parent=0
    #allocation2 [shape = 'u8[32768]{0}', space=vmem, size = 0x8000, scoped, tag = 'input window, operand 0, single buffered']
    #allocation3 [shape = 's32[1]{0}', space=sflag, size = 0x4, scoped, tag = 'scoped memory for tpu_custom_call.1']
    #allocation4 [shape = 's32[1]{0}', space=sflag, size = 0x4, scoped, tag = 'scoped memory for tpu_custom_call.1']
    #allocation5 [shape = 'u8[4096]{0}', space=vmem, size = 0x1000, scoped, tag = 'input window, operand 1, single buffered']
    #allocation6 [shape = 's32[1]{0}', space=sflag, size = 0x4, scoped, tag = 'scoped memory for tpu_custom_call.1']
    #allocation7 [shape = 'u8[4096]{0}', space=vmem, size = 0x1000, scoped, tag = 'input window, operand 2, single buffered']
    #allocation8 [shape = 'u8[32768]{0}', space=vmem, size = 0x8000, scoped, tag = 'output window, operand 0, single buffered']
    %8 = vsyncpa [#allocation3], 0
    %9 = vsyncpa [#allocation6], 0
    %10 = vsyncpa [#allocation4], 0
    // Predicated region
    $region2: #{tpu_custom_call.1} parent=1 // pred_check
      _
    $region3: #{tpu_custom_call.1} parent=1 // pred_check_branch
      %12 = sbr.rel (0) target = $region5
    $region4: #{tpu_custom_call.1} parent=1 // pred_region
      %s14 = ssub.s32 1024, 256
      %15 = vsyncadd [#allocation3], %s14
      %s16 = sshll.u32 [#allocation2], 4
      %s17 = int_to_ptr.vmem [resolvable:$true] %s16
      %22 = dma.hbm_to_vmem [thread:$0]  %s0, 256, %s17, [#allocation3], 256, 256, 16
    $region5: #{tpu_custom_call.1} parent=1 // pred_fallthru
      _
    // Predicated region
    $region6: #{tpu_custom_call.1} parent=1 // pred_check
      _
    $region7: #{tpu_custom_call.1} parent=1 // pred_check_branch
      %24 = sbr.rel (0) target = $region9
    $region8: #{tpu_custom_call.1} parent=1 // pred_region
      %s26 = ssub.s32 128, 128
      %27 = vsyncadd [#allocation6], %s26
      %s29 = sshll.u32 [#allocation5], 4
      %s30 = int_to_ptr.vmem [resolvable:$true] %s29
      %32 = dma.hbm_to_vmem [thread:$0]  %s1, 128, %s30, [#allocation6]
    $region9: #{tpu_custom_call.1} parent=1 // pred_fallthru
      _
    // Predicated region
    $region10: #{tpu_custom_call.1} parent=1 // pred_check
      _
    $region11: #{tpu_custom_call.1} parent=1 // pred_check_branch
      %34 = sbr.rel (0) target = $region13
    $region12: #{tpu_custom_call.1} parent=1 // pred_region
      %s36 = ssub.s32 128, 128
      %37 = vsyncadd [#allocation6], %s36
      %s39 = sshll.u32 [#allocation7], 4
      %s40 = int_to_ptr.vmem [resolvable:$true] %s39
      %42 = dma.hbm_to_vmem [thread:$0]  %s2, 128, %s40, [#allocation6]
    $region13: #{tpu_custom_call.1} parent=1 // pred_fallthru
      _
    // Predicated region
    $region14: #{tpu_custom_call.1} parent=1 // pred_check
      _
    $region15: #{tpu_custom_call.1} parent=1 // pred_check_branch
      %44 = sbr.rel (0) target = $region17
    $region16: #{tpu_custom_call.1} parent=1 // pred_region
      %45 = dma.done [#allocation3], 1024
    $region17: #{tpu_custom_call.1} parent=1 // pred_fallthru
      _
    // Predicated region
    $region18: #{tpu_custom_call.1} parent=1 // pred_check
      _
    $region19: #{tpu_custom_call.1} parent=1 // pred_check_branch
      %47 = sbr.rel (0) target = $region21
    $region20: #{tpu_custom_call.1} parent=1 // pred_region
      %48 = dma.done [#allocation6], 128
    $region21: #{tpu_custom_call.1} parent=1 // pred_fallthru
      _
    // Predicated region
    $region22: #{tpu_custom_call.1} parent=1 // pred_check
      _
    $region23: #{tpu_custom_call.1} parent=1 // pred_check_branch
      %50 = sbr.rel (0) target = $region25
    $region24: #{tpu_custom_call.1} parent=1 // pred_region
      %51 = dma.done [#allocation6], 128
    $region25: #{tpu_custom_call.1} parent=1 // pred_fallthru
      _
    %v52 = vld [vmem:[#allocation2] sm:$0xff]
    %v53 = vld [vmem:[#allocation2 + $0x8] sm:$0xff]
    %v54 = vld [vmem:[#allocation2 + $0x10] sm:$0xff]
    %v55 = vld [vmem:[#allocation2 + $0x18] sm:$0xff]
    %v56 = vld [vmem:[#allocation2 + $0x20] sm:$0xff]
    %v57 = vld [vmem:[#allocation2 + $0x28] sm:$0xff]
    %v58 = vld [vmem:[#allocation2 + $0x30] sm:$0xff]
    %v59 = vld [vmem:[#allocation2 + $0x38] sm:$0xff]
    %v60 = vld [vmem:[#allocation5] sm:$0xff]
    %v62 = vlaneseq
    %v63 = vshrl.u32 %v62, 7
    %v64 = vsub.s32 0, %v63
    %v65 = vrot.slane %v60, %v64
    %v66 = vlaneseq
    %v67 = vshrl.u32 %v66, 7
    %v68 = vsub.s32 1, %v67
    %v69 = vrot.slane %v60, %v68
    %v70 = vlaneseq
    %v71 = vshrl.u32 %v70, 7
    %v72 = vsub.s32 2, %v71
    %v73 = vrot.slane %v60, %v72
    %v74 = vlaneseq
    %v75 = vshrl.u32 %v74, 7
    %v76 = vsub.s32 3, %v75
    %v77 = vrot.slane %v60, %v76
    %v78 = vlaneseq
    %v79 = vshrl.u32 %v78, 7
    %v80 = vsub.s32 4, %v79
    %v81 = vrot.slane %v60, %v80
    %v82 = vlaneseq
    %v83 = vshrl.u32 %v82, 7
    %v84 = vsub.s32 5, %v83
    %v85 = vrot.slane %v60, %v84
    %v86 = vlaneseq
    %v87 = vshrl.u32 %v86, 7
    %v88 = vsub.s32 6, %v87
    %v89 = vrot.slane %v60, %v88
    %v90 = vlaneseq
    %v91 = vshrl.u32 %v90, 7
    %v92 = vsub.s32 7, %v91
    %v93 = vrot.slane %v60, %v92
    %v94 = vcombine.low %v65, %v69
    %v95 = vcombine.high %v65, %v69
    %v96 = vcombine.low %v73, %v77
    %v97 = vcombine.high %v73, %v77
    %v99 = vunpack.c.l.s4 1983009808
    %v100 = vunpack.c.0.s8 %v99
    %v101 = vlaneseq
    %v102 = vshrl.u32 %v101, 7
    %v103 = vsub.s32 %v100, %v102
    %v104 = vrot.slane %v94, %v103
    %v106 = vunpack.c.l.s4 1983009808
    %v107 = vunpack.c.0.s8 %v106
    %v108 = vlaneseq
    %v109 = vshrl.u32 %v108, 7
    %v110 = vsub.s32 %v107, %v109
    %v111 = vrot.slane %v95, %v110
    %v113 = vunpack.c.l.s4 1983009808
    %v114 = vunpack.c.0.s8 %v113
    %v115 = vlaneseq
    %v116 = vshrl.u32 %v115, 7
    %v117 = vsub.s32 %v114, %v116
    %v118 = vrot.slane %v96, %v117
    %v120 = vunpack.c.l.s4 1983009808
    %v121 = vunpack.c.0.s8 %v120
    %v122 = vlaneseq
    %v123 = vshrl.u32 %v122, 7
    %v124 = vsub.s32 %v121, %v123
    %v125 = vrot.slane %v97, %v124
    %v126 = vcombine.low %v104, %v118
    %v127 = vcombine.high %v104, %v118
    %v128 = vcombine.low %v111, %v125
    %v129 = vcombine.high %v111, %v125
    %v130 = vcombine.low %v81, %v85
    %v131 = vcombine.high %v81, %v85
    %v132 = vcombine.low %v89, %v93
    %v133 = vcombine.high %v89, %v93
    %v135 = vunpack.c.l.s4 1983009808
    %v136 = vunpack.c.0.s8 %v135
    %v137 = vlaneseq
    %v138 = vshrl.u32 %v137, 7
    %v139 = vsub.s32 %v136, %v138
    %v140 = vrot.slane %v130, %v139
    %v142 = vunpack.c.l.s4 1983009808
    %v143 = vunpack.c.0.s8 %v142
    %v144 = vlaneseq
    %v145 = vshrl.u32 %v144, 7
    %v146 = vsub.s32 %v143, %v145
    %v147 = vrot.slane %v131, %v146
    %v149 = vunpack.c.l.s4 1983009808
    %v150 = vunpack.c.0.s8 %v149
    %v151 = vlaneseq
    %v152 = vshrl.u32 %v151, 7
    %v153 = vsub.s32 %v150, %v152
    %v154 = vrot.slane %v132, %v153
    %v156 = vunpack.c.l.s4 1983009808
    %v157 = vunpack.c.0.s8 %v156
    %v158 = vlaneseq
    %v159 = vshrl.u32 %v158, 7
    %v160 = vsub.s32 %v157, %v159
    %v161 = vrot.slane %v133, %v160
    %v162 = vcombine.low %v140, %v154
    %v163 = vcombine.high %v140, %v154
    %v164 = vcombine.low %v147, %v161
    %v165 = vcombine.high %v147, %v161
    %v174 = vmul.f32 %v52, %v126
    %v175 = vmul.f32 %v53, %v162
    %v176 = vmul.f32 %v54, %v127
    %v177 = vmul.f32 %v55, %v163
    %v178 = vmul.f32 %v56, %v128
    %v179 = vmul.f32 %v57, %v164
    %v180 = vmul.f32 %v58, %v129
    %v181 = vmul.f32 %v59, %v165
    %v182 = vld [vmem:[#allocation7] sm:$0xff]
    %v184 = vlaneseq
    %v185 = vshrl.u32 %v184, 7
    %v186 = vsub.s32 0, %v185
    %v187 = vrot.slane %v182, %v186
    %v188 = vlaneseq
    %v189 = vshrl.u32 %v188, 7
    %v190 = vsub.s32 1, %v189
    %v191 = vrot.slane %v182, %v190
    %v192 = vlaneseq
    %v193 = vshrl.u32 %v192, 7
    %v194 = vsub.s32 2, %v193
    %v195 = vrot.slane %v182, %v194
    %v196 = vlaneseq
    %v197 = vshrl.u32 %v196, 7
    %v198 = vsub.s32 3, %v197
    %v199 = vrot.slane %v182, %v198
    %v200 = vlaneseq
    %v201 = vshrl.u32 %v200, 7
    %v202 = vsub.s32 4, %v201
    %v203 = vrot.slane %v182, %v202
    %v204 = vlaneseq
    %v205 = vshrl.u32 %v204, 7
    %v206 = vsub.s32 5, %v205
    %v207 = vrot.slane %v182, %v206
    %v208 = vlaneseq
    %v209 = vshrl.u32 %v208, 7
    %v210 = vsub.s32 6, %v209
    %v211 = vrot.slane %v182, %v210
    %v212 = vlaneseq
    %v213 = vshrl.u32 %v212, 7
    %v214 = vsub.s32 7, %v213
    %v215 = vrot.slane %v182, %v214
    %v216 = vcombine.low %v187, %v191
    %v217 = vcombine.high %v187, %v191
    %v218 = vcombine.low %v195, %v199
    %v219 = vcombine.high %v195, %v199
    %v221 = vunpack.c.l.s4 1983009808
    %v222 = vunpack.c.0.s8 %v221
    %v223 = vlaneseq
    %v224 = vshrl.u32 %v223, 7
    %v225 = vsub.s32 %v222, %v224
    %v226 = vrot.slane %v216, %v225
    %v228 = vunpack.c.l.s4 1983009808
    %v229 = vunpack.c.0.s8 %v228
    %v230 = vlaneseq
    %v231 = vshrl.u32 %v230, 7
    %v232 = vsub.s32 %v229, %v231
    %v233 = vrot.slane %v217, %v232
    %v235 = vunpack.c.l.s4 1983009808
    %v236 = vunpack.c.0.s8 %v235
    %v237 = vlaneseq
    %v238 = vshrl.u32 %v237, 7
    %v239 = vsub.s32 %v236, %v238
    %v240 = vrot.slane %v218, %v239
    %v242 = vunpack.c.l.s4 1983009808
    %v243 = vunpack.c.0.s8 %v242
    %v244 = vlaneseq
    %v245 = vshrl.u32 %v244, 7
    %v246 = vsub.s32 %v243, %v245
    %v247 = vrot.slane %v219, %v246
    %v248 = vcombine.low %v226, %v240
    %v249 = vcombine.high %v226, %v240
    %v250 = vcombine.low %v233, %v247
    %v251 = vcombine.high %v233, %v247
    %v252 = vcombine.low %v203, %v207
    %v253 = vcombine.high %v203, %v207
    %v254 = vcombine.low %v211, %v215
    %v255 = vcombine.high %v211, %v215
    %v257 = vunpack.c.l.s4 1983009808
    %v258 = vunpack.c.0.s8 %v257
    %v259 = vlaneseq
    %v260 = vshrl.u32 %v259, 7
    %v261 = vsub.s32 %v258, %v260
    %v262 = vrot.slane %v252, %v261
    %v264 = vunpack.c.l.s4 1983009808
    %v265 = vunpack.c.0.s8 %v264
    %v266 = vlaneseq
    %v267 = vshrl.u32 %v266, 7
    %v268 = vsub.s32 %v265, %v267
    %v269 = vrot.slane %v253, %v268
    %v271 = vunpack.c.l.s4 1983009808
    %v272 = vunpack.c.0.s8 %v271
    %v273 = vlaneseq
    %v274 = vshrl.u32 %v273, 7
    %v275 = vsub.s32 %v272, %v274
    %v276 = vrot.slane %v254, %v275
    %v278 = vunpack.c.l.s4 1983009808
    %v279 = vunpack.c.0.s8 %v278
    %v280 = vlaneseq
    %v281 = vshrl.u32 %v280, 7
    %v282 = vsub.s32 %v279, %v281
    %v283 = vrot.slane %v255, %v282
    %v284 = vcombine.low %v262, %v276
    %v285 = vcombine.high %v262, %v276
    %v286 = vcombine.low %v269, %v283
    %v287 = vcombine.high %v269, %v283
    %v296 = vadd.f32 %v174, %v248
    %v297 = vadd.f32 %v175, %v284
    %v298 = vadd.f32 %v176, %v249
    %v299 = vadd.f32 %v177, %v285
    %v300 = vadd.f32 %v178, %v250
    %v301 = vadd.f32 %v179, %v286
    %v302 = vadd.f32 %v180, %v251
    %v303 = vadd.f32 %v181, %v287
    %304 = vst [vmem:[#allocation8] sm:$0xff] %v296
    %305 = vst [vmem:[#allocation8 + $0x8] sm:$0xff] %v297
    %306 = vst [vmem:[#allocation8 + $0x10] sm:$0xff] %v298
    %307 = vst [vmem:[#allocation8 + $0x18] sm:$0xff] %v299
    %308 = vst [vmem:[#allocation8 + $0x20] sm:$0xff] %v300
    %309 = vst [vmem:[#allocation8 + $0x28] sm:$0xff] %v301
    %310 = vst [vmem:[#allocation8 + $0x30] sm:$0xff] %v302
    %311 = vst [vmem:[#allocation8 + $0x38] sm:$0xff] %v303
    // Predicated region
    $region26: #{tpu_custom_call.1} parent=1 // pred_check
      _
    $region27: #{tpu_custom_call.1} parent=1 // pred_check_branch
      %313 = sbr.rel (0) target = $region29
    $region28: #{tpu_custom_call.1} parent=1 // pred_region
      %s315 = ssub.s32 1024, 256
      %316 = vsyncadd [#allocation4], %s315
      %s317 = sshll.u32 [#allocation8], 4
      %s318 = int_to_ptr.vmem [resolvable:$true] %s317
      %323 = dma.vmem_to_hbm [thread:$0]  %s318, 256, %s3, [#allocation4], 256, 256, 16
    $region29: #{tpu_custom_call.1} parent=1 // pred_fallthru
      _
    // Predicated region
    $region30: #{tpu_custom_call.1} parent=1 // pred_check
      _
    $region31: #{tpu_custom_call.1} parent=1 // pred_check_branch
      %325 = sbr.rel (0) target = $region33
    $region32: #{tpu_custom_call.1} parent=1 // pred_region
      %326 = dma.done [#allocation4], 1024
    $region33: #{tpu_custom_call.1} parent=1 // pred_fallthru
      _
    %327 = vsyncpa [#allocation3], 1
    %328 = vsyncpa [#allocation6], 1
    %329 = vsyncpa [#allocation4], 1

</llo_original>
